<compile_context>
chip_gen: v7x
topology: tpu7x:2x2x1
jax: 0.10.0
libtpu: 0.0.40
codegen_flags: <defaults>
</compile_context>

<pallas_src>
import functools

import jax
import jax.numpy as jnp
from jax.experimental import pallas as pl
from jax.experimental.pallas import tpu as pltpu


def _lstm_kernel(x_ref, wih_ref, wrec_ref, hcb_ref, out_ref, *, seq, bp, hidden):
    """Single-invocation LSTM + final linear.

    x_ref   : (seq*bp, D)   batch-padded inputs (rows >= real batch are zero)
    wih_ref : (D, 4H)       W_ih^T, gate order [f,i,o,g], sigmoid cols * 0.5
    wrec_ref: (4H, 8H)      [:, :4H] = W_hh^T (rows >= H zero), same permutation
                            [:, 4H:] = W_ho^T lane-padded to 4H (rows >= H zero)
    hcb_ref : (4*bp, 4H)    rows [0,bp): h0, [bp,2bp): c0 (lanes >= H zero),
                            row 2bp: permuted/prescaled LSTM bias,
                            row 3bp: output bias lane-padded to 4H
    out_ref : (bp, 4H)      lanes [0, output_dim) hold the real result
    """
    H = hidden
    G = 4 * H

    bias = hcb_ref[2 * bp:2 * bp + 1, :]                           # (1, 4H)
    # Input projection for all timesteps in one MXU matmul, hoisted out of the
    # serial recurrence: (seq*bp, D) @ (D, 4H) + bias.
    gx = jnp.dot(x_ref[...], wih_ref[...],
                 preferred_element_type=jnp.float32) + bias        # (seq*bp, 4H) f32

    # Gate layout along the 4H lanes (after wrapper permutation): [f, i, o, g].
    lane = jax.lax.broadcasted_iota(jnp.int32, (bp, G), 1)
    is_g = lane >= 3 * H                                           # tanh-gate block

    whh = wrec_ref[:, :G]           # (4H, 4H); rows >= H are zero
    h = hcb_ref[0:bp, :]            # (bp, 4H) f32; lanes >= H start at zero
    c = hcb_ref[bp:2 * bp, :]

    for t in range(seq):            # static unroll over the short fixed sequence
        gates = gx[t * bp:(t + 1) * bp, :] + jnp.dot(
            h.astype(whh.dtype), whh, preferred_element_type=jnp.float32)
        th = jnp.tanh(gates)                        # single EUP transcendental
        # sigmoid-gate weights were pre-scaled by 0.5: sigmoid(z)=0.5*tanh(z/2)+0.5
        act = jnp.where(is_g, th, 0.5 * th + 0.5)   # [f, i, o, g] activations
        rolled = pltpu.roll(act, 2 * H, 1)          # block0 <- o, block1 <- g
        ig = pltpu.roll(act * rolled, 3 * H, 1)     # block0 <- i*g
        c = act * c + ig                            # block0: f*c + i*g   (valid)
        h = rolled * jnp.tanh(c)                    # block0: o*tanh(c)   (valid)
        # Junk lanes stay bounded (|act|,|rolled| <= 1) and only ever multiply
        # zero rows of W_hh^T / W_ho^T, so they cannot reach valid outputs.

    out = (jnp.dot(h.astype(whh.dtype), wrec_ref[:, G:2 * G],
                   preferred_element_type=jnp.float32)
           + hcb_ref[3 * bp:3 * bp + 1, :])
    out_ref[...] = out.astype(out_ref.dtype)        # full (8,128) lane-dense store


def prepare_lstm_params(w_ih, w_hh, b_ih, b_hh, w_ho, b_ho, mxu_dtype=jnp.float32):
    """One-time weight packing (do NOT rebuild per forward call).

    PyTorch layout in : w_ih (4H, D), w_hh (4H, H), b_ih/b_hh (4H,) with gate
    order [i, f, g, o]; w_ho (O, H), b_ho (O,).
    Packed layout out : gate order [f, i, o, g]; the sigmoid-gate (f, i, o)
    rows of w_ih / w_hh / bias are pre-scaled by 0.5 (sigmoid-via-tanh trick).
    """
    f32 = jnp.float32
    H = w_hh.shape[1]
    G = 4 * H
    O = w_ho.shape[0]

    def permute_and_prescale(a):
        a = jnp.asarray(a, f32)
        i, f, g, o = a[0:H], a[H:2 * H], a[2 * H:3 * H], a[3 * H:4 * H]
        return jnp.concatenate([0.5 * f, 0.5 * i, 0.5 * o, g], axis=0)

    wih_p = permute_and_prescale(w_ih)                       # (4H, D)
    whh_p = permute_and_prescale(w_hh)                       # (4H, H)
    b_p = permute_and_prescale(jnp.asarray(b_ih, f32) + jnp.asarray(b_hh, f32))

    wih_t = wih_p.T.astype(mxu_dtype)                        # (D, 4H)
    w_rec = jnp.zeros((G, 2 * G), f32)
    w_rec = w_rec.at[:H, :G].set(whh_p.T)                    # W_hh^T, rows >= H zero
    w_rec = w_rec.at[:H, G:G + O].set(jnp.asarray(w_ho, f32).T)   # W_ho^T lane-padded
    w_rec = w_rec.astype(mxu_dtype)

    bias_row = b_p.reshape(1, G)                             # stays f32
    bo_row = jnp.zeros((1, G), f32).at[0, :O].set(jnp.asarray(b_ho, f32))

    return dict(wih_t=wih_t, w_rec=w_rec, bias=bias_row, bo=bo_row,
                hidden=H, out_dim=O)


def lstm_baseline_forward(x, h0, c0, params, batch_pad=8):
    """x: (seq, batch, D); h0, c0: (batch, H).  Returns (batch, out_dim)."""
    f32 = jnp.float32
    seq, B, D = x.shape
    H = params["hidden"]
    O = params["out_dim"]
    G = 4 * H
    BP = max(batch_pad, B)

    # Batch-pad to BP rows per timestep so each per-step gate block is one
    # aligned (8,128) vreg slice inside the kernel.
    xp = jnp.zeros((seq, BP, D), f32).at[:, :B, :].set(jnp.asarray(x, f32))
    x2d = xp.reshape(seq * BP, D).astype(params["wih_t"].dtype)

    # Pack h0 / c0 / LSTM bias / output bias into ONE small operand (fewer DMAs).
    hcb = jnp.zeros((4 * BP, G), f32)
    hcb = hcb.at[0:B, :H].set(jnp.asarray(h0, f32))
    hcb = hcb.at[BP:BP + B, :H].set(jnp.asarray(c0, f32))
    hcb = hcb.at[2 * BP:2 * BP + 1, :].set(params["bias"])
    hcb = hcb.at[3 * BP:3 * BP + 1, :].set(params["bo"])

    kernel = functools.partial(_lstm_kernel, seq=seq, bp=BP, hidden=H)
    vmem = pltpu.MemorySpace.VMEM

    out = pl.pallas_call(
        kernel,
        out_shape=jax.ShapeDtypeStruct((BP, G), f32),
        in_specs=[pl.BlockSpec(memory_space=vmem)] * 4,
        out_specs=pl.BlockSpec(memory_space=vmem),
    )(x2d, params["wih_t"], params["w_rec"], hcb)
    return out[:B, :O]


def _reference_forward(x, w_ih, w_hh, b_ih, b_hh, h0, c0, w_ho, b_ho):
    """Pure-JAX reference of the same LSTM + last-step linear (PyTorch semantics)."""
    H = w_hh.shape[1]

    def step(carry, x_t):
        h, c = carry
        gates = x_t @ w_ih.T + h @ w_hh.T + b_ih + b_hh
        i = jax.nn.sigmoid(gates[:, 0 * H:1 * H])
        f = jax.nn.sigmoid(gates[:, 1 * H:2 * H])
        g = jnp.tanh(gates[:, 2 * H:3 * H])
        o = jax.nn.sigmoid(gates[:, 3 * H:4 * H])
        c = f * c + i * g
        h = o * jnp.tanh(c)
        return (h, c), h

    (h_T, _), _ = jax.lax.scan(step, (h0, c0), x)
    return h_T @ w_ho.T + b_ho


if __name__ == "__main__":
    # Small shapes consistent with the module:
    #   embedding_dim=24, position_emb_dim=8 -> input_dim=32, hidden=32,
    #   output_dim=8, batch=2, seq=8
    # TODO(synk): temprel2embeddingSeq (emb_cache + nn.Embedding lookup) happens
    # outside forward(); the kernel consumes the already-embedded sequence.
    SEQ, B = 8, 2
    EMB_DIM, POS_DIM = 24, 8
    D = EMB_DIM + POS_DIM
    H = 32
    O = 8

    key = jax.random.PRNGKey(0)
    ks = jax.random.split(key, 10)

    # Input sequence (as built by temprel2embeddingSeq: (seq, batch, emb+pos))
    x = jax.random.normal(ks[0], (SEQ, B, D), jnp.float32)

    # Deterministic "parameter init" (module __init__ shapes)
    scale = 1.0 / jnp.sqrt(H)
    w_ih = jax.random.uniform(ks[1], (4 * H, D), jnp.float32, -scale, scale)
    w_hh = jax.random.uniform(ks[2], (4 * H, H), jnp.float32, -scale, scale)
    b_ih = jax.random.uniform(ks[3], (4 * H,), jnp.float32, -scale, scale)
    b_hh = jax.random.uniform(ks[4], (4 * H,), jnp.float32, -scale, scale)
    w_ho = jax.random.uniform(ks[5], (O, H), jnp.float32, -scale, scale)
    b_ho = jax.random.uniform(ks[6], (O,), jnp.float32, -scale, scale)

    # init_hidden() uses randn each forward -> deterministic randn here
    h0 = jax.random.normal(ks[7], (B, H), jnp.float32)
    c0 = jax.random.normal(ks[8], (B, H), jnp.float32)

    ref = _reference_forward(x, w_ih, w_hh, b_ih, b_hh, h0, c0, w_ho, b_ho)

    # ---- f32 MXU path (numerically faithful to the module; tight tolerance) ----
    params_f32 = prepare_lstm_params(w_ih, w_hh, b_ih, b_hh, w_ho, b_ho)
    fwd_f32 = jax.jit(lambda xx, hh, cc: lstm_baseline_forward(xx, hh, cc, params_f32))
    out = jax.block_until_ready(fwd_f32(x, h0, c0))
    assert out.shape == (B, O)
    assert jnp.allclose(out, ref, atol=1e-4, rtol=1e-4)

    # ---- optional bf16 MXU-operand path (per perf review; elementwise math and
    #      the c/h state stay f32) — relaxed tolerance is expected here ----
    params_b16 = prepare_lstm_params(w_ih, w_hh, b_ih, b_hh, w_ho, b_ho,
                                     mxu_dtype=jnp.bfloat16)
    fwd_b16 = jax.jit(lambda xx, hh, cc: lstm_baseline_forward(xx, hh, cc, params_b16))
    out_b16 = jax.block_until_ready(fwd_b16(x, h0, c0))
    assert out_b16.shape == (B, O)
    assert jnp.allclose(out_b16, ref, atol=5e-2, rtol=5e-2)

    print("KERNEL_OK")
</pallas_src>

<mosaic_0001>
module attributes {stable_mosaic.version = 11 : i64} {
  func.func @_lstm_kernel(%arg0: memref<64x32xf32, #tpu.memory_space<vmem>>, %arg1: memref<32x128xf32, #tpu.memory_space<vmem>>, %arg2: memref<128x256xf32, #tpu.memory_space<vmem>>, %arg3: memref<32x128xf32, #tpu.memory_space<vmem>>, %arg4: memref<8x128xf32, #tpu.memory_space<vmem>>) attributes {dimension_semantics = [], scalar_prefetch = 0 : i64, scratch_operands = 0 : i64, tpu.core_type = #tpu.core_type<tc>} {
    %c16 = arith.constant 16 : index
    %c0 = arith.constant 0 : index
    %0 = vector.load %arg3[%c16, %c0] : memref<32x128xf32, #tpu.memory_space<vmem>>, vector<1x128xf32>
    %c0_0 = arith.constant 0 : index
    %c0_1 = arith.constant 0 : index
    %1 = vector.load %arg0[%c0_0, %c0_1] : memref<64x32xf32, #tpu.memory_space<vmem>>, vector<64x32xf32>
    %c0_2 = arith.constant 0 : index
    %c0_3 = arith.constant 0 : index
    %2 = vector.load %arg1[%c0_2, %c0_3] : memref<32x128xf32, #tpu.memory_space<vmem>>, vector<32x128xf32>
    %cst = arith.constant dense<0.000000e+00> : vector<64x128xf32>
    %3 = tpu.matmul %1, %2, %cst {dimension_numbers = #tpu.dot_dimension_numbers<[1], [0], [0], [1], [0, 0, 1, 1], [], []>} : vector<64x32xf32>, vector<32x128xf32>, vector<64x128xf32> -> vector<64x128xf32>
    %4 = vector.broadcast %0 : vector<1x128xf32> to vector<64x128xf32>
    %5 = arith.addf %3, %4 : vector<64x128xf32>
    %6 = tpu.iota {dimensions = array<i32: 1>} : vector<8x128xi32>
    %c96_i32 = arith.constant 96 : i32
    %7 = vector.broadcast %c96_i32 : i32 to vector<8x128xi32>
    %8 = arith.cmpi sge, %6, %7 : vector<8x128xi32>
    %c0_4 = arith.constant 0 : index
    %c0_5 = arith.constant 0 : index
    %9 = vector.load %arg2[%c0_4, %c0_5] : memref<128x256xf32, #tpu.memory_space<vmem>>, vector<128x128xf32>
    %c0_6 = arith.constant 0 : index
    %c0_7 = arith.constant 0 : index
    %10 = vector.load %arg3[%c0_6, %c0_7] : memref<32x128xf32, #tpu.memory_space<vmem>>, vector<8x128xf32>
    %c8 = arith.constant 8 : index
    %c0_8 = arith.constant 0 : index
    %11 = vector.load %arg3[%c8, %c0_8] : memref<32x128xf32, #tpu.memory_space<vmem>>, vector<8x128xf32>
    %12 = vector.extract_strided_slice %5 {offsets = [0, 0], sizes = [8, 128], strides = [1, 1]} : vector<64x128xf32> to vector<8x128xf32>
    %cst_9 = arith.constant dense<0.000000e+00> : vector<8x128xf32>
    %13 = tpu.matmul %10, %9, %cst_9 {dimension_numbers = #tpu.dot_dimension_numbers<[1], [0], [0], [1], [0, 0, 1, 1], [], []>} : vector<8x128xf32>, vector<128x128xf32>, vector<8x128xf32> -> vector<8x128xf32>
    %14 = arith.addf %12, %13 : vector<8x128xf32>
    %15 = math.tanh %14 : vector<8x128xf32>
    %cst_10 = arith.constant 5.000000e-01 : f32
    %16 = vector.broadcast %cst_10 : f32 to vector<8x128xf32>
    %17 = arith.mulf %16, %15 : vector<8x128xf32>
    %cst_11 = arith.constant 5.000000e-01 : f32
    %18 = vector.broadcast %cst_11 : f32 to vector<8x128xf32>
    %19 = arith.addf %17, %18 : vector<8x128xf32>
    %20 = arith.select %8, %15, %19 : vector<8x128xi1>, vector<8x128xf32>
    %c64_i32 = arith.constant 64 : i32
    %21 = tpu.dynamic_rotate %20 by %c64_i32 dim 1 : vector<8x128xf32>, i32 -> vector<8x128xf32>
    %22 = arith.mulf %20, %21 : vector<8x128xf32>
    %c96_i32_12 = arith.constant 96 : i32
    %23 = tpu.dynamic_rotate %22 by %c96_i32_12 dim 1 : vector<8x128xf32>, i32 -> vector<8x128xf32>
    %24 = arith.mulf %20, %11 : vector<8x128xf32>
    %25 = arith.addf %24, %23 : vector<8x128xf32>
    %26 = math.tanh %25 : vector<8x128xf32>
    %27 = arith.mulf %21, %26 : vector<8x128xf32>
    %28 = vector.extract_strided_slice %5 {offsets = [8, 0], sizes = [8, 128], strides = [1, 1]} : vector<64x128xf32> to vector<8x128xf32>
    %cst_13 = arith.constant dense<0.000000e+00> : vector<8x128xf32>
    %29 = tpu.matmul %27, %9, %cst_13 {dimension_numbers = #tpu.dot_dimension_numbers<[1], [0], [0], [1], [0, 0, 1, 1], [], []>} : vector<8x128xf32>, vector<128x128xf32>, vector<8x128xf32> -> vector<8x128xf32>
    %30 = arith.addf %28, %29 : vector<8x128xf32>
    %31 = math.tanh %30 : vector<8x128xf32>
    %cst_14 = arith.constant 5.000000e-01 : f32
    %32 = vector.broadcast %cst_14 : f32 to vector<8x128xf32>
    %33 = arith.mulf %32, %31 : vector<8x128xf32>
    %cst_15 = arith.constant 5.000000e-01 : f32
    %34 = vector.broadcast %cst_15 : f32 to vector<8x128xf32>
    %35 = arith.addf %33, %34 : vector<8x128xf32>
    %36 = arith.select %8, %31, %35 : vector<8x128xi1>, vector<8x128xf32>
    %c64_i32_16 = arith.constant 64 : i32
    %37 = tpu.dynamic_rotate %36 by %c64_i32_16 dim 1 : vector<8x128xf32>, i32 -> vector<8x128xf32>
    %38 = arith.mulf %36, %37 : vector<8x128xf32>
    %c96_i32_17 = arith.constant 96 : i32
    %39 = tpu.dynamic_rotate %38 by %c96_i32_17 dim 1 : vector<8x128xf32>, i32 -> vector<8x128xf32>
    %40 = arith.mulf %36, %25 : vector<8x128xf32>
    %41 = arith.addf %40, %39 : vector<8x128xf32>
    %42 = math.tanh %41 : vector<8x128xf32>
    %43 = arith.mulf %37, %42 : vector<8x128xf32>
    %44 = vector.extract_strided_slice %5 {offsets = [16, 0], sizes = [8, 128], strides = [1, 1]} : vector<64x128xf32> to vector<8x128xf32>
    %cst_18 = arith.constant dense<0.000000e+00> : vector<8x128xf32>
    %45 = tpu.matmul %43, %9, %cst_18 {dimension_numbers = #tpu.dot_dimension_numbers<[1], [0], [0], [1], [0, 0, 1, 1], [], []>} : vector<8x128xf32>, vector<128x128xf32>, vector<8x128xf32> -> vector<8x128xf32>
    %46 = arith.addf %44, %45 : vector<8x128xf32>
    %47 = math.tanh %46 : vector<8x128xf32>
    %cst_19 = arith.constant 5.000000e-01 : f32
    %48 = vector.broadcast %cst_19 : f32 to vector<8x128xf32>
    %49 = arith.mulf %48, %47 : vector<8x128xf32>
    %cst_20 = arith.constant 5.000000e-01 : f32
    %50 = vector.broadcast %cst_20 : f32 to vector<8x128xf32>
    %51 = arith.addf %49, %50 : vector<8x128xf32>
    %52 = arith.select %8, %47, %51 : vector<8x128xi1>, vector<8x128xf32>
    %c64_i32_21 = arith.constant 64 : i32
    %53 = tpu.dynamic_rotate %52 by %c64_i32_21 dim 1 : vector<8x128xf32>, i32 -> vector<8x128xf32>
    %54 = arith.mulf %52, %53 : vector<8x128xf32>
    %c96_i32_22 = arith.constant 96 : i32
    %55 = tpu.dynamic_rotate %54 by %c96_i32_22 dim 1 : vector<8x128xf32>, i32 -> vector<8x128xf32>
    %56 = arith.mulf %52, %41 : vector<8x128xf32>
    %57 = arith.addf %56, %55 : vector<8x128xf32>
    %58 = math.tanh %57 : vector<8x128xf32>
    %59 = arith.mulf %53, %58 : vector<8x128xf32>
    %60 = vector.extract_strided_slice %5 {offsets = [24, 0], sizes = [8, 128], strides = [1, 1]} : vector<64x128xf32> to vector<8x128xf32>
    %cst_23 = arith.constant dense<0.000000e+00> : vector<8x128xf32>
    %61 = tpu.matmul %59, %9, %cst_23 {dimension_numbers = #tpu.dot_dimension_numbers<[1], [0], [0], [1], [0, 0, 1, 1], [], []>} : vector<8x128xf32>, vector<128x128xf32>, vector<8x128xf32> -> vector<8x128xf32>
    %62 = arith.addf %60, %61 : vector<8x128xf32>
    %63 = math.tanh %62 : vector<8x128xf32>
    %cst_24 = arith.constant 5.000000e-01 : f32
    %64 = vector.broadcast %cst_24 : f32 to vector<8x128xf32>
    %65 = arith.mulf %64, %63 : vector<8x128xf32>
    %cst_25 = arith.constant 5.000000e-01 : f32
    %66 = vector.broadcast %cst_25 : f32 to vector<8x128xf32>
    %67 = arith.addf %65, %66 : vector<8x128xf32>
    %68 = arith.select %8, %63, %67 : vector<8x128xi1>, vector<8x128xf32>
    %c64_i32_26 = arith.constant 64 : i32
    %69 = tpu.dynamic_rotate %68 by %c64_i32_26 dim 1 : vector<8x128xf32>, i32 -> vector<8x128xf32>
    %70 = arith.mulf %68, %69 : vector<8x128xf32>
    %c96_i32_27 = arith.constant 96 : i32
    %71 = tpu.dynamic_rotate %70 by %c96_i32_27 dim 1 : vector<8x128xf32>, i32 -> vector<8x128xf32>
    %72 = arith.mulf %68, %57 : vector<8x128xf32>
    %73 = arith.addf %72, %71 : vector<8x128xf32>
    %74 = math.tanh %73 : vector<8x128xf32>
    %75 = arith.mulf %69, %74 : vector<8x128xf32>
    %76 = vector.extract_strided_slice %5 {offsets = [32, 0], sizes = [8, 128], strides = [1, 1]} : vector<64x128xf32> to vector<8x128xf32>
    %cst_28 = arith.constant dense<0.000000e+00> : vector<8x128xf32>
    %77 = tpu.matmul %75, %9, %cst_28 {dimension_numbers = #tpu.dot_dimension_numbers<[1], [0], [0], [1], [0, 0, 1, 1], [], []>} : vector<8x128xf32>, vector<128x128xf32>, vector<8x128xf32> -> vector<8x128xf32>
    %78 = arith.addf %76, %77 : vector<8x128xf32>
    %79 = math.tanh %78 : vector<8x128xf32>
    %cst_29 = arith.constant 5.000000e-01 : f32
    %80 = vector.broadcast %cst_29 : f32 to vector<8x128xf32>
    %81 = arith.mulf %80, %79 : vector<8x128xf32>
    %cst_30 = arith.constant 5.000000e-01 : f32
    %82 = vector.broadcast %cst_30 : f32 to vector<8x128xf32>
    %83 = arith.addf %81, %82 : vector<8x128xf32>
    %84 = arith.select %8, %79, %83 : vector<8x128xi1>, vector<8x128xf32>
    %c64_i32_31 = arith.constant 64 : i32
    %85 = tpu.dynamic_rotate %84 by %c64_i32_31 dim 1 : vector<8x128xf32>, i32 -> vector<8x128xf32>
    %86 = arith.mulf %84, %85 : vector<8x128xf32>
    %c96_i32_32 = arith.constant 96 : i32
    %87 = tpu.dynamic_rotate %86 by %c96_i32_32 dim 1 : vector<8x128xf32>, i32 -> vector<8x128xf32>
    %88 = arith.mulf %84, %73 : vector<8x128xf32>
    %89 = arith.addf %88, %87 : vector<8x128xf32>
    %90 = math.tanh %89 : vector<8x128xf32>
    %91 = arith.mulf %85, %90 : vector<8x128xf32>
    %92 = vector.extract_strided_slice %5 {offsets = [40, 0], sizes = [8, 128], strides = [1, 1]} : vector<64x128xf32> to vector<8x128xf32>
    %cst_33 = arith.constant dense<0.000000e+00> : vector<8x128xf32>
    %93 = tpu.matmul %91, %9, %cst_33 {dimension_numbers = #tpu.dot_dimension_numbers<[1], [0], [0], [1], [0, 0, 1, 1], [], []>} : vector<8x128xf32>, vector<128x128xf32>, vector<8x128xf32> -> vector<8x128xf32>
    %94 = arith.addf %92, %93 : vector<8x128xf32>
    %95 = math.tanh %94 : vector<8x128xf32>
    %cst_34 = arith.constant 5.000000e-01 : f32
    %96 = vector.broadcast %cst_34 : f32 to vector<8x128xf32>
    %97 = arith.mulf %96, %95 : vector<8x128xf32>
    %cst_35 = arith.constant 5.000000e-01 : f32
    %98 = vector.broadcast %cst_35 : f32 to vector<8x128xf32>
    %99 = arith.addf %97, %98 : vector<8x128xf32>
    %100 = arith.select %8, %95, %99 : vector<8x128xi1>, vector<8x128xf32>
    %c64_i32_36 = arith.constant 64 : i32
    %101 = tpu.dynamic_rotate %100 by %c64_i32_36 dim 1 : vector<8x128xf32>, i32 -> vector<8x128xf32>
    %102 = arith.mulf %100, %101 : vector<8x128xf32>
    %c96_i32_37 = arith.constant 96 : i32
    %103 = tpu.dynamic_rotate %102 by %c96_i32_37 dim 1 : vector<8x128xf32>, i32 -> vector<8x128xf32>
    %104 = arith.mulf %100, %89 : vector<8x128xf32>
    %105 = arith.addf %104, %103 : vector<8x128xf32>
    %106 = math.tanh %105 : vector<8x128xf32>
    %107 = arith.mulf %101, %106 : vector<8x128xf32>
    %108 = vector.extract_strided_slice %5 {offsets = [48, 0], sizes = [8, 128], strides = [1, 1]} : vector<64x128xf32> to vector<8x128xf32>
    %cst_38 = arith.constant dense<0.000000e+00> : vector<8x128xf32>
    %109 = tpu.matmul %107, %9, %cst_38 {dimension_numbers = #tpu.dot_dimension_numbers<[1], [0], [0], [1], [0, 0, 1, 1], [], []>} : vector<8x128xf32>, vector<128x128xf32>, vector<8x128xf32> -> vector<8x128xf32>
    %110 = arith.addf %108, %109 : vector<8x128xf32>
    %111 = math.tanh %110 : vector<8x128xf32>
    %cst_39 = arith.constant 5.000000e-01 : f32
    %112 = vector.broadcast %cst_39 : f32 to vector<8x128xf32>
    %113 = arith.mulf %112, %111 : vector<8x128xf32>
    %cst_40 = arith.constant 5.000000e-01 : f32
    %114 = vector.broadcast %cst_40 : f32 to vector<8x128xf32>
    %115 = arith.addf %113, %114 : vector<8x128xf32>
    %116 = arith.select %8, %111, %115 : vector<8x128xi1>, vector<8x128xf32>
    %c64_i32_41 = arith.constant 64 : i32
    %117 = tpu.dynamic_rotate %116 by %c64_i32_41 dim 1 : vector<8x128xf32>, i32 -> vector<8x128xf32>
    %118 = arith.mulf %116, %117 : vector<8x128xf32>
    %c96_i32_42 = arith.constant 96 : i32
    %119 = tpu.dynamic_rotate %118 by %c96_i32_42 dim 1 : vector<8x128xf32>, i32 -> vector<8x128xf32>
    %120 = arith.mulf %116, %105 : vector<8x128xf32>
    %121 = arith.addf %120, %119 : vector<8x128xf32>
    %122 = math.tanh %121 : vector<8x128xf32>
    %123 = arith.mulf %117, %122 : vector<8x128xf32>
    %124 = vector.extract_strided_slice %5 {offsets = [56, 0], sizes = [8, 128], strides = [1, 1]} : vector<64x128xf32> to vector<8x128xf32>
    %cst_43 = arith.constant dense<0.000000e+00> : vector<8x128xf32>
    %125 = tpu.matmul %123, %9, %cst_43 {dimension_numbers = #tpu.dot_dimension_numbers<[1], [0], [0], [1], [0, 0, 1, 1], [], []>} : vector<8x128xf32>, vector<128x128xf32>, vector<8x128xf32> -> vector<8x128xf32>
    %126 = arith.addf %124, %125 : vector<8x128xf32>
    %127 = math.tanh %126 : vector<8x128xf32>
    %cst_44 = arith.constant 5.000000e-01 : f32
    %128 = vector.broadcast %cst_44 : f32 to vector<8x128xf32>
    %129 = arith.mulf %128, %127 : vector<8x128xf32>
    %cst_45 = arith.constant 5.000000e-01 : f32
    %130 = vector.broadcast %cst_45 : f32 to vector<8x128xf32>
    %131 = arith.addf %129, %130 : vector<8x128xf32>
    %132 = arith.select %8, %127, %131 : vector<8x128xi1>, vector<8x128xf32>
    %c64_i32_46 = arith.constant 64 : i32
    %133 = tpu.dynamic_rotate %132 by %c64_i32_46 dim 1 : vector<8x128xf32>, i32 -> vector<8x128xf32>
    %134 = arith.mulf %132, %133 : vector<8x128xf32>
    %c96_i32_47 = arith.constant 96 : i32
    %135 = tpu.dynamic_rotate %134 by %c96_i32_47 dim 1 : vector<8x128xf32>, i32 -> vector<8x128xf32>
    %136 = arith.mulf %132, %121 : vector<8x128xf32>
    %137 = arith.addf %136, %135 : vector<8x128xf32>
    %138 = math.tanh %137 : vector<8x128xf32>
    %139 = arith.mulf %133, %138 : vector<8x128xf32>
    %c0_48 = arith.constant 0 : index
    %c128 = arith.constant 128 : index
    %140 = vector.load %arg2[%c0_48, %c128] : memref<128x256xf32, #tpu.memory_space<vmem>>, vector<128x128xf32>
    %cst_49 = arith.constant dense<0.000000e+00> : vector<8x128xf32>
    %141 = tpu.matmul %139, %140, %cst_49 {dimension_numbers = #tpu.dot_dimension_numbers<[1], [0], [0], [1], [0, 0, 1, 1], [], []>} : vector<8x128xf32>, vector<128x128xf32>, vector<8x128xf32> -> vector<8x128xf32>
    %c24 = arith.constant 24 : index
    %c0_50 = arith.constant 0 : index
    %142 = vector.load %arg3[%c24, %c0_50] : memref<32x128xf32, #tpu.memory_space<vmem>>, vector<1x128xf32>
    %143 = vector.broadcast %142 : vector<1x128xf32> to vector<8x128xf32>
    %144 = arith.addf %141, %143 : vector<8x128xf32>
    %c0_51 = arith.constant 0 : index
    %c0_52 = arith.constant 0 : index
    %145 = vector.load %arg4[%c0_51, %c0_52] : memref<8x128xf32, #tpu.memory_space<vmem>>, vector<8x128xf32>
    tpu.vector_store %arg4[%c0_51, %c0_52], %144 {strides = array<i32>} : memref<8x128xf32, #tpu.memory_space<vmem>>, vector<8x128xf32>,
    return
  }
}

</mosaic_0001>

<llo_original>
// kernel: _lambda_.1
$region0: #{_lambda_.1}
  #allocation0 [shape = 'u32[]', space=smem, size = 0x4, offset = 0x4, fixed_abs, tag = 'smem constant byte address 0x4 - core index']
  #allocation1 [shape = 'u32[144,128]{1,0:T(1,128)}', space=vmem, size = 0x12000, scoped, tag = 'internal scratch']
  %s0 = inlined_call_operand.vmem [shape: f32[64,32], index: 0, kind: input, shape index: {}]
  %s1 = inlined_call_operand.vmem [shape: f32[32,128], index: 1, kind: input, shape index: {}]
  %s2 = inlined_call_operand.hbm [shape: f32[128,256], index: 2, kind: input, shape index: {}]
  %s3 = inlined_call_operand.vmem [shape: f32[32,128], index: 3, kind: input, shape index: {}]
  %s4 = inlined_call_operand.vmem [shape: f32[8,128], index: 4, kind: output, shape index: {}]
  %s5 = sld [smem:[#allocation0]]
  $region30: #{_lambda_.1} parent=0
    _
  %s7 = ssub.s32 1, %s5
  %s8 = scalar_select 0, %s7, %s5
  $region1: #{_lambda_.1} parent=0
    #allocation2 [shape = 'u8[131072]{0}', space=vmem, size = 0x20000, scoped, tag = 'input window, operand 2, single buffered']
    #allocation3 [shape = 's32[1]{0}', space=sflag, size = 0x4, scoped, tag = 'scoped memory for _lambda_.1']
    %9 = vsyncpa [#allocation3], 0
    // Predicated region
    $region2: #{_lambda_.1} parent=1 // pred_check
      _
    $region3: #{_lambda_.1} parent=1 // pred_check_branch
      %11 = sbr.rel (0) target = $region5
    $region4: #{_lambda_.1} parent=1 // pred_region
      _
    $region5: #{_lambda_.1} parent=1 // pred_fallthru
      _
    // Predicated region
    $region6: #{_lambda_.1} parent=1 // pred_check
      _
    $region7: #{_lambda_.1} parent=1 // pred_check_branch
      %13 = sbr.rel (0) target = $region9
    $region8: #{_lambda_.1} parent=1 // pred_region
      _
    $region9: #{_lambda_.1} parent=1 // pred_fallthru
      _
    // Predicated region
    $region10: #{_lambda_.1} parent=1 // pred_check
      _
    $region11: #{_lambda_.1} parent=1 // pred_check_branch
      %15 = sbr.rel (0) target = $region13
    $region12: #{_lambda_.1} parent=1 // pred_region
      %s17 = ssub.s32 4096, 4096
      %18 = vsyncadd [#allocation3], %s17
      %s19 = sshll.u32 [#allocation2], 4
      %s20 = int_to_ptr.vmem [resolvable:$true] %s19
      %25 = dma.hbm_to_vmem [thread:$0]  %s2, 4096, %s20, [#allocation3], 256, 256, 16
    $region13: #{_lambda_.1} parent=1 // pred_fallthru
      _
    // Predicated region
    $region14: #{_lambda_.1} parent=1 // pred_check
      _
    $region15: #{_lambda_.1} parent=1 // pred_check_branch
      %27 = sbr.rel (0) target = $region17
    $region16: #{_lambda_.1} parent=1 // pred_region
      _
    $region17: #{_lambda_.1} parent=1 // pred_fallthru
      _
    // Predicated region
    $region18: #{_lambda_.1} parent=1 // pred_check
      _
    $region19: #{_lambda_.1} parent=1 // pred_check_branch
      %29 = sbr.rel (0) target = $region21
    $region20: #{_lambda_.1} parent=1 // pred_region
      %30 = dma.done [#allocation3], 4096
    $region21: #{_lambda_.1} parent=1 // pred_fallthru
      _
    %v31 = vld [vmem:[%s3 + $0x10] sm:$0x1]
    %v32 = vld [vmem:[%s0] sm:$0xff]
    %v33 = vld [vmem:[%s0 + $0x8] sm:$0xff]
    %v34 = vld [vmem:[%s0 + $0x10] sm:$0xff]
    %v35 = vld [vmem:[%s0 + $0x18] sm:$0xff]
    %v36 = vld [vmem:[%s0 + $0x20] sm:$0xff]
    %v37 = vld [vmem:[%s0 + $0x28] sm:$0xff]
    %v38 = vld [vmem:[%s0 + $0x30] sm:$0xff]
    %v39 = vld [vmem:[%s0 + $0x38] sm:$0xff]
    %v40 = vld [vmem:[%s1] sm:$0xff]
    %v41 = vld [vmem:[%s1 + $0x8] sm:$0xff]
    %v42 = vld [vmem:[%s1 + $0x10] sm:$0xff]
    %v43 = vld [vmem:[%s1 + $0x18] sm:$0xff]
    %v44 = vlaneseq
    %v45 = vshrl.u32 %v44, 7
    %v46 = vsub.s32 0, %v45
    %v47 = vrot.slane %v31, %v46
    %vm48 = vcmask 261120
    %v50 = vsel %vm48, %v32, 0
    %v53 = vsel %vm48, %v33, 0
    %v56 = vsel %vm48, %v34, 0
    %v59 = vsel %vm48, %v35, 0
    %v62 = vsel %vm48, %v36, 0
    %v65 = vsel %vm48, %v37, 0
    %v68 = vsel %vm48, %v38, 0
    %v71 = vsel %vm48, %v39, 0
    %73 = vmatprep.subr.mxu0 0.0
    %74 = vmatpush1.msra.mxu0 %v40
    %75 = vmatprep.subr.mxu0 0.0
    %76 = vmatpush1.msra.mxu0 %v41
    %77 = vmatprep.subr.mxu0 0.0
    %78 = vmatpush1.msra.mxu0 %v42
    %79 = vmatprep.subr.mxu0 0.0
    %80 = vmatpush1.msra.mxu0 %v43
    %81 = vmatprep.subr.mxu0 0.0
    %82 = vmatpush1.msra.mxu0 0.0
    %83 = vmatprep.subr.mxu0 0.0
    %84 = vmatpush1.msra.mxu0 0.0
    %85 = vmatprep.subr.mxu0 0.0
    %86 = vmatpush1.msra.mxu0 0.0
    %87 = vmatprep.subr.mxu0 0.0
    %88 = vmatpush1.msra.mxu0 0.0
    %89 = vmatprep.subr.mxu0 0.0
    %90 = vmatpush1.msra.mxu0 0.0
    %91 = vmatprep.subr.mxu0 0.0
    %92 = vmatpush1.msra.mxu0 0.0
    %93 = vmatprep.subr.mxu0 0.0
    %94 = vmatpush1.msra.mxu0 0.0
    %95 = vmatprep.subr.mxu0 0.0
    %96 = vmatpush1.msra.mxu0 0.0
    %97 = vmatprep.subr.mxu0 0.0
    %98 = vmatpush1.msra.mxu0 0.0
    %99 = vmatprep.subr.mxu0 0.0
    %100 = vmatpush1.msra.mxu0 0.0
    %101 = vmatprep.subr.mxu0 0.0
    %102 = vmatpush1.msra.mxu0 0.0
    %103 = vmatprep.subr.mxu0 0.0
    %104 = vmatpush1.msra.mxu0 0.0
    %105 = vmatprep.subr.mxu0 0.0
    %106 = vmatpush1.msra.mxu0 0.0
    %107 = vmatprep.subr.mxu0 0.0
    %108 = vmatpush1.msra.mxu0 0.0
    %109 = vmatprep.subr.mxu0 0.0
    %110 = vmatpush1.msra.mxu0 0.0
    %111 = vmatprep.subr.mxu0 0.0
    %112 = vmatpush1.msra.mxu0 0.0
    %113 = vmatprep.subr.mxu0 0.0
    %114 = vmatpush1.msra.mxu0 0.0
    %115 = vmatprep.subr.mxu0 0.0
    %116 = vmatpush1.msra.mxu0 0.0
    %117 = vmatprep.subr.mxu0 0.0
    %118 = vmatpush1.msra.mxu0 0.0
    %119 = vmatprep.subr.mxu0 0.0
    %120 = vmatpush1.msra.mxu0 0.0
    %121 = vmatprep.subr.mxu0 0.0
    %122 = vmatpush1.msra.mxu0 0.0
    %123 = vmatprep.subr.mxu0 0.0
    %124 = vmatpush1.msra.mxu0 0.0
    %125 = vmatprep.subr.mxu0 0.0
    %126 = vmatpush1.msra.mxu0 0.0
    %127 = vmatprep.subr.mxu0 0.0
    %128 = vmatpush1.msra.mxu0 0.0
    %129 = vmatprep.subr.mxu0 0.0
    %130 = vmatpush1.msra.mxu0 0.0
    %131 = vmatprep.subr.mxu0 0.0
    %132 = vmatpush1.msra.mxu0 0.0
    %133 = vmatprep.subr.mxu0 0.0
    %134 = vmatpush1.msra.mxu0 0.0
    %135 = vmatprep.subr.mxu0 0.0
    %136 = vmatpush1.msra.mxu0 0.0
    %137 = vmatprep.mubr.f32.mxu0 0.0
    %138 = vmatmul.mubr.f32.gmra.mrb[0].mxu0 %v50
    %v139 = vpop.f32.mrb[0].mxu0
    %v140 = vadd.f32 %v47, %v139
    %v141 = vpop.f32.mrb[0].mxu0
    %142 = vmatprep.mubr.f32.mxu0 0.0
    %143 = vmatmul.mubr.f32.gmra.mrb[0].mxu0 %v53
    %v144 = vpop.f32.mrb[0].mxu0
    %v145 = vadd.f32 %v47, %v144
    %v146 = vpop.f32.mrb[0].mxu0
    %147 = vmatprep.mubr.f32.mxu0 0.0
    %148 = vmatmul.mubr.f32.gmra.mrb[0].mxu0 %v56
    %v149 = vpop.f32.mrb[0].mxu0
    %v150 = vadd.f32 %v47, %v149
    %v151 = vpop.f32.mrb[0].mxu0
    %152 = vmatprep.mubr.f32.mxu0 0.0
    %153 = vmatmul.mubr.f32.gmra.mrb[0].mxu0 %v59
    %v154 = vpop.f32.mrb[0].mxu0
    %v155 = vadd.f32 %v47, %v154
    %v156 = vpop.f32.mrb[0].mxu0
    %157 = vmatprep.mubr.f32.mxu0 0.0
    %158 = vmatmul.mubr.f32.gmra.mrb[0].mxu0 %v62
    %v159 = vpop.f32.mrb[0].mxu0
    %v160 = vadd.f32 %v47, %v159
    %v161 = vpop.f32.mrb[0].mxu0
    %162 = vmatprep.mubr.f32.mxu0 0.0
    %163 = vmatmul.mubr.f32.gmra.mrb[0].mxu0 %v65
    %v164 = vpop.f32.mrb[0].mxu0
    %v165 = vadd.f32 %v47, %v164
    %v166 = vpop.f32.mrb[0].mxu0
    %167 = vmatprep.mubr.f32.mxu0 0.0
    %168 = vmatmul.mubr.f32.gmra.mrb[0].mxu0 %v68
    %v169 = vpop.f32.mrb[0].mxu0
    %v170 = vadd.f32 %v47, %v169
    %v171 = vpop.f32.mrb[0].mxu0
    %172 = vmatprep.mubr.f32.mxu0 0.0
    %173 = vmatmul.mubr.f32.gmra.mrb[0].mxu0 %v71
    %v174 = vpop.f32.mrb[0].mxu0
    %v175 = vadd.f32 %v47, %v174
    %v176 = vpop.f32.mrb[0].mxu0
    %177 = vdwg.mxu0
    %v178 = vlaneseq
    %v179 = vand.u32 %v178, 127
    %vm180 = vcmp.ge.s32.totalorder %v179, 96
    %v181 = vld [vmem:[#allocation2] sm:$0xff]
    %v182 = vld [vmem:[#allocation2 + $0x10] sm:$0xff]
    %v183 = vld [vmem:[#allocation2 + $0x20] sm:$0xff]
    %v184 = vld [vmem:[#allocation2 + $0x30] sm:$0xff]
    %v185 = vld [vmem:[#allocation2 + $0x40] sm:$0xff]
    %v186 = vld [vmem:[#allocation2 + $0x50] sm:$0xff]
    %v187 = vld [vmem:[#allocation2 + $0x60] sm:$0xff]
    %v188 = vld [vmem:[#allocation2 + $0x70] sm:$0xff]
    %v189 = vld [vmem:[#allocation2 + $0x80] sm:$0xff]
    %v190 = vld [vmem:[#allocation2 + $0x90] sm:$0xff]
    %v191 = vld [vmem:[#allocation2 + $0xa0] sm:$0xff]
    %v192 = vld [vmem:[#allocation2 + $0xb0] sm:$0xff]
    %v193 = vld [vmem:[#allocation2 + $0xc0] sm:$0xff]
    %v194 = vld [vmem:[#allocation2 + $0xd0] sm:$0xff]
    %v195 = vld [vmem:[#allocation2 + $0xe0] sm:$0xff]
    %v196 = vld [vmem:[#allocation2 + $0xf0] sm:$0xff]
    %v197 = vld [vmem:[%s3] sm:$0xff]
    %v198 = vld [vmem:[%s3 + $0x8] sm:$0xff]
    %199 = vmatprep.subr.mxu0 0.0
    %200 = vmatpush1.msra.mxu0 %v181
    %201 = vmatprep.subr.mxu0 0.0
    %202 = vmatpush1.msra.mxu0 %v182
    %203 = vmatprep.subr.mxu0 0.0
    %204 = vmatpush1.msra.mxu0 %v183
    %205 = vmatprep.subr.mxu0 0.0
    %206 = vmatpush1.msra.mxu0 %v184
    %207 = vmatprep.subr.mxu0 0.0
    %208 = vmatpush1.msra.mxu0 %v185
    %209 = vmatprep.subr.mxu0 0.0
    %210 = vmatpush1.msra.mxu0 %v186
    %211 = vmatprep.subr.mxu0 0.0
    %212 = vmatpush1.msra.mxu0 %v187
    %213 = vmatprep.subr.mxu0 0.0
    %214 = vmatpush1.msra.mxu0 %v188
    %215 = vmatprep.subr.mxu0 0.0
    %216 = vmatpush1.msra.mxu0 %v189
    %217 = vmatprep.subr.mxu0 0.0
    %218 = vmatpush1.msra.mxu0 %v190
    %219 = vmatprep.subr.mxu0 0.0
    %220 = vmatpush1.msra.mxu0 %v191
    %221 = vmatprep.subr.mxu0 0.0
    %222 = vmatpush1.msra.mxu0 %v192
    %223 = vmatprep.subr.mxu0 0.0
    %224 = vmatpush1.msra.mxu0 %v193
    %225 = vmatprep.subr.mxu0 0.0
    %226 = vmatpush1.msra.mxu0 %v194
    %227 = vmatprep.subr.mxu0 0.0
    %228 = vmatpush1.msra.mxu0 %v195
    %229 = vmatprep.subr.mxu0 0.0
    %230 = vmatpush1.msra.mxu0 %v196
    %231 = vmatprep.subr.mxu0 0.0
    %232 = vmatpush1.msra.mxu0 0.0
    %233 = vmatprep.subr.mxu0 0.0
    %234 = vmatpush1.msra.mxu0 0.0
    %235 = vmatprep.subr.mxu0 0.0
    %236 = vmatpush1.msra.mxu0 0.0
    %237 = vmatprep.subr.mxu0 0.0
    %238 = vmatpush1.msra.mxu0 0.0
    %239 = vmatprep.subr.mxu0 0.0
    %240 = vmatpush1.msra.mxu0 0.0
    %241 = vmatprep.subr.mxu0 0.0
    %242 = vmatpush1.msra.mxu0 0.0
    %243 = vmatprep.subr.mxu0 0.0
    %244 = vmatpush1.msra.mxu0 0.0
    %245 = vmatprep.subr.mxu0 0.0
    %246 = vmatpush1.msra.mxu0 0.0
    %247 = vmatprep.subr.mxu0 0.0
    %248 = vmatpush1.msra.mxu0 0.0
    %249 = vmatprep.subr.mxu0 0.0
    %250 = vmatpush1.msra.mxu0 0.0
    %251 = vmatprep.subr.mxu0 0.0
    %252 = vmatpush1.msra.mxu0 0.0
    %253 = vmatprep.subr.mxu0 0.0
    %254 = vmatpush1.msra.mxu0 0.0
    %255 = vmatprep.subr.mxu0 0.0
    %256 = vmatpush1.msra.mxu0 0.0
    %257 = vmatprep.subr.mxu0 0.0
    %258 = vmatpush1.msra.mxu0 0.0
    %259 = vmatprep.subr.mxu0 0.0
    %260 = vmatpush1.msra.mxu0 0.0
    %261 = vmatprep.subr.mxu0 0.0
    %262 = vmatpush1.msra.mxu0 0.0
    %263 = vmatprep.mubr.f32.mxu0 0.0
    %264 = vmatmul.mubr.f32.gmra.mrb[0].mxu0 %v197
    %v265 = vpop.f32.mrb[0].mxu0
    %v266 = vadd.f32 0.0, %v265
    %v267 = vpop.f32.mrb[0].mxu0
    %268 = vdwg.mxu0
    %v269 = vadd.f32 %v140, %v266
    %v270 = vtanh.pop %v269
    %v271 = vmul.f32 %v270, 0.5
    %v272 = vadd.f32 %v271, 0.5
    %v273 = vsel %vm180, %v270, %v272
    %274 = vrot.lane.b32.xlu0 %v273, 64
    %v275 = vpop.permute.xlu0 %274
    %v276 = vmul.f32 %v273, %v275
    %277 = vrot.lane.b32.xlu0 %v276, 96
    %v278 = vpop.permute.xlu0 %277
    %v279 = vmul.f32 %v273, %v198
    %v280 = vadd.f32 %v279, %v278
    %v281 = vtanh.pop %v280
    %v282 = vmul.f32 %v275, %v281
    %283 = vmatprep.subr.mxu0 0.0
    %284 = vmatpush1.msra.mxu0 %v181
    %285 = vmatprep.subr.mxu0 0.0
    %286 = vmatpush1.msra.mxu0 %v182
    %287 = vmatprep.subr.mxu0 0.0
    %288 = vmatpush1.msra.mxu0 %v183
    %289 = vmatprep.subr.mxu0 0.0
    %290 = vmatpush1.msra.mxu0 %v184
    %291 = vmatprep.subr.mxu0 0.0
    %292 = vmatpush1.msra.mxu0 %v185
    %293 = vmatprep.subr.mxu0 0.0
    %294 = vmatpush1.msra.mxu0 %v186
    %295 = vmatprep.subr.mxu0 0.0
    %296 = vmatpush1.msra.mxu0 %v187
    %297 = vmatprep.subr.mxu0 0.0
    %298 = vmatpush1.msra.mxu0 %v188
    %299 = vmatprep.subr.mxu0 0.0
    %300 = vmatpush1.msra.mxu0 %v189
    %301 = vmatprep.subr.mxu0 0.0
    %302 = vmatpush1.msra.mxu0 %v190
    %303 = vmatprep.subr.mxu0 0.0
    %304 = vmatpush1.msra.mxu0 %v191
    %305 = vmatprep.subr.mxu0 0.0
    %306 = vmatpush1.msra.mxu0 %v192
    %307 = vmatprep.subr.mxu0 0.0
    %308 = vmatpush1.msra.mxu0 %v193
    %309 = vmatprep.subr.mxu0 0.0
    %310 = vmatpush1.msra.mxu0 %v194
    %311 = vmatprep.subr.mxu0 0.0
    %312 = vmatpush1.msra.mxu0 %v195
    %313 = vmatprep.subr.mxu0 0.0
    %314 = vmatpush1.msra.mxu0 %v196
    %315 = vmatprep.subr.mxu0 0.0
    %316 = vmatpush1.msra.mxu0 0.0
    %317 = vmatprep.subr.mxu0 0.0
    %318 = vmatpush1.msra.mxu0 0.0
    %319 = vmatprep.subr.mxu0 0.0
    %320 = vmatpush1.msra.mxu0 0.0
    %321 = vmatprep.subr.mxu0 0.0
    %322 = vmatpush1.msra.mxu0 0.0
    %323 = vmatprep.subr.mxu0 0.0
    %324 = vmatpush1.msra.mxu0 0.0
    %325 = vmatprep.subr.mxu0 0.0
    %326 = vmatpush1.msra.mxu0 0.0
    %327 = vmatprep.subr.mxu0 0.0
    %328 = vmatpush1.msra.mxu0 0.0
    %329 = vmatprep.subr.mxu0 0.0
    %330 = vmatpush1.msra.mxu0 0.0
    %331 = vmatprep.subr.mxu0 0.0
    %332 = vmatpush1.msra.mxu0 0.0
    %333 = vmatprep.subr.mxu0 0.0
    %334 = vmatpush1.msra.mxu0 0.0
    %335 = vmatprep.subr.mxu0 0.0
    %336 = vmatpush1.msra.mxu0 0.0
    %337 = vmatprep.subr.mxu0 0.0
    %338 = vmatpush1.msra.mxu0 0.0
    %339 = vmatprep.subr.mxu0 0.0
    %340 = vmatpush1.msra.mxu0 0.0
    %341 = vmatprep.subr.mxu0 0.0
    %342 = vmatpush1.msra.mxu0 0.0
    %343 = vmatprep.subr.mxu0 0.0
    %344 = vmatpush1.msra.mxu0 0.0
    %345 = vmatprep.subr.mxu0 0.0
    %346 = vmatpush1.msra.mxu0 0.0
    %347 = vmatprep.mubr.f32.mxu0 0.0
    %348 = vmatmul.mubr.f32.gmra.mrb[0].mxu0 %v282
    %v349 = vpop.f32.mrb[0].mxu0
    %v350 = vadd.f32 0.0, %v349
    %v351 = vpop.f32.mrb[0].mxu0
    %352 = vdwg.mxu0
    %v353 = vadd.f32 %v145, %v350
    %v354 = vtanh.pop %v353
    %v355 = vmul.f32 %v354, 0.5
    %v356 = vadd.f32 %v355, 0.5
    %v357 = vsel %vm180, %v354, %v356
    %358 = vrot.lane.b32.xlu0 %v357, 64
    %v359 = vpop.permute.xlu0 %358
    %v360 = vmul.f32 %v357, %v359
    %361 = vrot.lane.b32.xlu0 %v360, 96
    %v362 = vpop.permute.xlu0 %361
    %v363 = vmul.f32 %v357, %v280
    %v364 = vadd.f32 %v363, %v362
    %v365 = vtanh.pop %v364
    %v366 = vmul.f32 %v359, %v365
    %367 = vmatprep.subr.mxu0 0.0
    %368 = vmatpush1.msra.mxu0 %v181
    %369 = vmatprep.subr.mxu0 0.0
    %370 = vmatpush1.msra.mxu0 %v182
    %371 = vmatprep.subr.mxu0 0.0
    %372 = vmatpush1.msra.mxu0 %v183
    %373 = vmatprep.subr.mxu0 0.0
    %374 = vmatpush1.msra.mxu0 %v184
    %375 = vmatprep.subr.mxu0 0.0
    %376 = vmatpush1.msra.mxu0 %v185
    %377 = vmatprep.subr.mxu0 0.0
    %378 = vmatpush1.msra.mxu0 %v186
    %379 = vmatprep.subr.mxu0 0.0
    %380 = vmatpush1.msra.mxu0 %v187
    %381 = vmatprep.subr.mxu0 0.0
    %382 = vmatpush1.msra.mxu0 %v188
    %383 = vmatprep.subr.mxu0 0.0
    %384 = vmatpush1.msra.mxu0 %v189
    %385 = vmatprep.subr.mxu0 0.0
    %386 = vmatpush1.msra.mxu0 %v190
    %387 = vmatprep.subr.mxu0 0.0
    %388 = vmatpush1.msra.mxu0 %v191
    %389 = vmatprep.subr.mxu0 0.0
    %390 = vmatpush1.msra.mxu0 %v192
    %391 = vmatprep.subr.mxu0 0.0
    %392 = vmatpush1.msra.mxu0 %v193
    %393 = vmatprep.subr.mxu0 0.0
    %394 = vmatpush1.msra.mxu0 %v194
    %395 = vmatprep.subr.mxu0 0.0
    %396 = vmatpush1.msra.mxu0 %v195
    %397 = vmatprep.subr.mxu0 0.0
    %398 = vmatpush1.msra.mxu0 %v196
    %399 = vmatprep.subr.mxu0 0.0
    %400 = vmatpush1.msra.mxu0 0.0
    %401 = vmatprep.subr.mxu0 0.0
    %402 = vmatpush1.msra.mxu0 0.0
    %403 = vmatprep.subr.mxu0 0.0
    %404 = vmatpush1.msra.mxu0 0.0
    %405 = vmatprep.subr.mxu0 0.0
    %406 = vmatpush1.msra.mxu0 0.0
    %407 = vmatprep.subr.mxu0 0.0
    %408 = vmatpush1.msra.mxu0 0.0
    %409 = vmatprep.subr.mxu0 0.0
    %410 = vmatpush1.msra.mxu0 0.0
    %411 = vmatprep.subr.mxu0 0.0
    %412 = vmatpush1.msra.mxu0 0.0
    %413 = vmatprep.subr.mxu0 0.0
    %414 = vmatpush1.msra.mxu0 0.0
    %415 = vmatprep.subr.mxu0 0.0
    %416 = vmatpush1.msra.mxu0 0.0
    %417 = vmatprep.subr.mxu0 0.0
    %418 = vmatpush1.msra.mxu0 0.0
    %419 = vmatprep.subr.mxu0 0.0
    %420 = vmatpush1.msra.mxu0 0.0
    %421 = vmatprep.subr.mxu0 0.0
    %422 = vmatpush1.msra.mxu0 0.0
    %423 = vmatprep.subr.mxu0 0.0
    %424 = vmatpush1.msra.mxu0 0.0
    %425 = vmatprep.subr.mxu0 0.0
    %426 = vmatpush1.msra.mxu0 0.0
    %427 = vmatprep.subr.mxu0 0.0
    %428 = vmatpush1.msra.mxu0 0.0
    %429 = vmatprep.subr.mxu0 0.0
    %430 = vmatpush1.msra.mxu0 0.0
    %431 = vmatprep.mubr.f32.mxu0 0.0
    %432 = vmatmul.mubr.f32.gmra.mrb[0].mxu0 %v366
    %v433 = vpop.f32.mrb[0].mxu0
    %v434 = vadd.f32 0.0, %v433
    %v435 = vpop.f32.mrb[0].mxu0
    %436 = vdwg.mxu0
    %v437 = vadd.f32 %v150, %v434
    %v438 = vtanh.pop %v437
    %v439 = vmul.f32 %v438, 0.5
    %v440 = vadd.f32 %v439, 0.5
    %v441 = vsel %vm180, %v438, %v440
    %442 = vrot.lane.b32.xlu0 %v441, 64
    %v443 = vpop.permute.xlu0 %442
    %v444 = vmul.f32 %v441, %v443
    %445 = vrot.lane.b32.xlu0 %v444, 96
    %v446 = vpop.permute.xlu0 %445
    %v447 = vmul.f32 %v441, %v364
    %v448 = vadd.f32 %v447, %v446
    %v449 = vtanh.pop %v448
    %v450 = vmul.f32 %v443, %v449
    %451 = vmatprep.subr.mxu0 0.0
    %452 = vmatpush1.msra.mxu0 %v181
    %453 = vmatprep.subr.mxu0 0.0
    %454 = vmatpush1.msra.mxu0 %v182
    %455 = vmatprep.subr.mxu0 0.0
    %456 = vmatpush1.msra.mxu0 %v183
    %457 = vmatprep.subr.mxu0 0.0
    %458 = vmatpush1.msra.mxu0 %v184
    %459 = vmatprep.subr.mxu0 0.0
    %460 = vmatpush1.msra.mxu0 %v185
    %461 = vmatprep.subr.mxu0 0.0
    %462 = vmatpush1.msra.mxu0 %v186
    %463 = vmatprep.subr.mxu0 0.0
    %464 = vmatpush1.msra.mxu0 %v187
    %465 = vmatprep.subr.mxu0 0.0
    %466 = vmatpush1.msra.mxu0 %v188
    %467 = vmatprep.subr.mxu0 0.0
    %468 = vmatpush1.msra.mxu0 %v189
    %469 = vmatprep.subr.mxu0 0.0
    %470 = vmatpush1.msra.mxu0 %v190
    %471 = vmatprep.subr.mxu0 0.0
    %472 = vmatpush1.msra.mxu0 %v191
    %473 = vmatprep.subr.mxu0 0.0
    %474 = vmatpush1.msra.mxu0 %v192
    %475 = vmatprep.subr.mxu0 0.0
    %476 = vmatpush1.msra.mxu0 %v193
    %477 = vmatprep.subr.mxu0 0.0
    %478 = vmatpush1.msra.mxu0 %v194
    %479 = vmatprep.subr.mxu0 0.0
    %480 = vmatpush1.msra.mxu0 %v195
    %481 = vmatprep.subr.mxu0 0.0
    %482 = vmatpush1.msra.mxu0 %v196
    %483 = vmatprep.subr.mxu0 0.0
    %484 = vmatpush1.msra.mxu0 0.0
    %485 = vmatprep.subr.mxu0 0.0
    %486 = vmatpush1.msra.mxu0 0.0
    %487 = vmatprep.subr.mxu0 0.0
    %488 = vmatpush1.msra.mxu0 0.0
    %489 = vmatprep.subr.mxu0 0.0
    %490 = vmatpush1.msra.mxu0 0.0
    %491 = vmatprep.subr.mxu0 0.0
    %492 = vmatpush1.msra.mxu0 0.0
    %493 = vmatprep.subr.mxu0 0.0
    %494 = vmatpush1.msra.mxu0 0.0
    %495 = vmatprep.subr.mxu0 0.0
    %496 = vmatpush1.msra.mxu0 0.0
    %497 = vmatprep.subr.mxu0 0.0
    %498 = vmatpush1.msra.mxu0 0.0
    %499 = vmatprep.subr.mxu0 0.0
    %500 = vmatpush1.msra.mxu0 0.0
    %501 = vmatprep.subr.mxu0 0.0
    %502 = vmatpush1.msra.mxu0 0.0
    %503 = vmatprep.subr.mxu0 0.0
    %504 = vmatpush1.msra.mxu0 0.0
    %505 = vmatprep.subr.mxu0 0.0
    %506 = vmatpush1.msra.mxu0 0.0
    %507 = vmatprep.subr.mxu0 0.0
    %508 = vmatpush1.msra.mxu0 0.0
    %509 = vmatprep.subr.mxu0 0.0
    %510 = vmatpush1.msra.mxu0 0.0
    %511 = vmatprep.subr.mxu0 0.0
    %512 = vmatpush1.msra.mxu0 0.0
    %513 = vmatprep.subr.mxu0 0.0
    %514 = vmatpush1.msra.mxu0 0.0
    %515 = vmatprep.mubr.f32.mxu0 0.0
    %516 = vmatmul.mubr.f32.gmra.mrb[0].mxu0 %v450
    %v517 = vpop.f32.mrb[0].mxu0
    %v518 = vadd.f32 0.0, %v517
    %v519 = vpop.f32.mrb[0].mxu0
    %520 = vdwg.mxu0
    %v521 = vadd.f32 %v155, %v518
    %v522 = vtanh.pop %v521
    %v523 = vmul.f32 %v522, 0.5
    %v524 = vadd.f32 %v523, 0.5
    %v525 = vsel %vm180, %v522, %v524
    %526 = vrot.lane.b32.xlu0 %v525, 64
    %v527 = vpop.permute.xlu0 %526
    %v528 = vmul.f32 %v525, %v527
    %529 = vrot.lane.b32.xlu0 %v528, 96
    %v530 = vpop.permute.xlu0 %529
    %v531 = vmul.f32 %v525, %v448
    %v532 = vadd.f32 %v531, %v530
    %v533 = vtanh.pop %v532
    %v534 = vmul.f32 %v527, %v533
    %535 = vmatprep.subr.mxu0 0.0
    %536 = vmatpush1.msra.mxu0 %v181
    %537 = vmatprep.subr.mxu0 0.0
    %538 = vmatpush1.msra.mxu0 %v182
    %539 = vmatprep.subr.mxu0 0.0
    %540 = vmatpush1.msra.mxu0 %v183
    %541 = vmatprep.subr.mxu0 0.0
    %542 = vmatpush1.msra.mxu0 %v184
    %543 = vmatprep.subr.mxu0 0.0
    %544 = vmatpush1.msra.mxu0 %v185
    %545 = vmatprep.subr.mxu0 0.0
    %546 = vmatpush1.msra.mxu0 %v186
    %547 = vmatprep.subr.mxu0 0.0
    %548 = vmatpush1.msra.mxu0 %v187
    %549 = vmatprep.subr.mxu0 0.0
    %550 = vmatpush1.msra.mxu0 %v188
    %551 = vmatprep.subr.mxu0 0.0
    %552 = vmatpush1.msra.mxu0 %v189
    %553 = vmatprep.subr.mxu0 0.0
    %554 = vmatpush1.msra.mxu0 %v190
    %555 = vmatprep.subr.mxu0 0.0
    %556 = vmatpush1.msra.mxu0 %v191
    %557 = vmatprep.subr.mxu0 0.0
    %558 = vmatpush1.msra.mxu0 %v192
    %559 = vmatprep.subr.mxu0 0.0
    %560 = vmatpush1.msra.mxu0 %v193
    %561 = vmatprep.subr.mxu0 0.0
    %562 = vmatpush1.msra.mxu0 %v194
    %563 = vmatprep.subr.mxu0 0.0
    %564 = vmatpush1.msra.mxu0 %v195
    %565 = vmatprep.subr.mxu0 0.0
    %566 = vmatpush1.msra.mxu0 %v196
    %567 = vmatprep.subr.mxu0 0.0
    %568 = vmatpush1.msra.mxu0 0.0
    %569 = vmatprep.subr.mxu0 0.0
    %570 = vmatpush1.msra.mxu0 0.0
    %571 = vmatprep.subr.mxu0 0.0
    %572 = vmatpush1.msra.mxu0 0.0
    %573 = vmatprep.subr.mxu0 0.0
    %574 = vmatpush1.msra.mxu0 0.0
    %575 = vmatprep.subr.mxu0 0.0
    %576 = vmatpush1.msra.mxu0 0.0
    %577 = vmatprep.subr.mxu0 0.0
    %578 = vmatpush1.msra.mxu0 0.0
    %579 = vmatprep.subr.mxu0 0.0
    %580 = vmatpush1.msra.mxu0 0.0
    %581 = vmatprep.subr.mxu0 0.0
    %582 = vmatpush1.msra.mxu0 0.0
    %583 = vmatprep.subr.mxu0 0.0
    %584 = vmatpush1.msra.mxu0 0.0
    %585 = vmatprep.subr.mxu0 0.0
    %586 = vmatpush1.msra.mxu0 0.0
    %587 = vmatprep.subr.mxu0 0.0
    %588 = vmatpush1.msra.mxu0 0.0
    %589 = vmatprep.subr.mxu0 0.0
    %590 = vmatpush1.msra.mxu0 0.0
    %591 = vmatprep.subr.mxu0 0.0
    %592 = vmatpush1.msra.mxu0 0.0
    %593 = vmatprep.subr.mxu0 0.0
    %594 = vmatpush1.msra.mxu0 0.0
    %595 = vmatprep.subr.mxu0 0.0
    %596 = vmatpush1.msra.mxu0 0.0
    %597 = vmatprep.subr.mxu0 0.0
    %598 = vmatpush1.msra.mxu0 0.0
    %599 = vmatprep.mubr.f32.mxu0 0.0
    %600 = vmatmul.mubr.f32.gmra.mrb[0].mxu0 %v534
    %v601 = vpop.f32.mrb[0].mxu0
    %v602 = vadd.f32 0.0, %v601
    %v603 = vpop.f32.mrb[0].mxu0
    %604 = vdwg.mxu0
    %v605 = vadd.f32 %v160, %v602
    %v606 = vtanh.pop %v605
    %v607 = vmul.f32 %v606, 0.5
    %v608 = vadd.f32 %v607, 0.5
    %v609 = vsel %vm180, %v606, %v608
    %610 = vrot.lane.b32.xlu0 %v609, 64
    %v611 = vpop.permute.xlu0 %610
    %v612 = vmul.f32 %v609, %v611
    %613 = vrot.lane.b32.xlu0 %v612, 96
    %v614 = vpop.permute.xlu0 %613
    %v615 = vmul.f32 %v609, %v532
    %v616 = vadd.f32 %v615, %v614
    %v617 = vtanh.pop %v616
    %v618 = vmul.f32 %v611, %v617
    %619 = vmatprep.subr.mxu0 0.0
    %620 = vmatpush1.msra.mxu0 %v181
    %621 = vmatprep.subr.mxu0 0.0
    %622 = vmatpush1.msra.mxu0 %v182
    %623 = vmatprep.subr.mxu0 0.0
    %624 = vmatpush1.msra.mxu0 %v183
    %625 = vmatprep.subr.mxu0 0.0
    %626 = vmatpush1.msra.mxu0 %v184
    %627 = vmatprep.subr.mxu0 0.0
    %628 = vmatpush1.msra.mxu0 %v185
    %629 = vmatprep.subr.mxu0 0.0
    %630 = vmatpush1.msra.mxu0 %v186
    %631 = vmatprep.subr.mxu0 0.0
    %632 = vmatpush1.msra.mxu0 %v187
    %633 = vmatprep.subr.mxu0 0.0
    %634 = vmatpush1.msra.mxu0 %v188
    %635 = vmatprep.subr.mxu0 0.0
    %636 = vmatpush1.msra.mxu0 %v189
    %637 = vmatprep.subr.mxu0 0.0
    %638 = vmatpush1.msra.mxu0 %v190
    %639 = vmatprep.subr.mxu0 0.0
    %640 = vmatpush1.msra.mxu0 %v191
    %641 = vmatprep.subr.mxu0 0.0
    %642 = vmatpush1.msra.mxu0 %v192
    %643 = vmatprep.subr.mxu0 0.0
    %644 = vmatpush1.msra.mxu0 %v193
    %645 = vmatprep.subr.mxu0 0.0
    %646 = vmatpush1.msra.mxu0 %v194
    %647 = vmatprep.subr.mxu0 0.0
    %648 = vmatpush1.msra.mxu0 %v195
    %649 = vmatprep.subr.mxu0 0.0
    %650 = vmatpush1.msra.mxu0 %v196
    %651 = vmatprep.subr.mxu0 0.0
    %652 = vmatpush1.msra.mxu0 0.0
    %653 = vmatprep.subr.mxu0 0.0
    %654 = vmatpush1.msra.mxu0 0.0
    %655 = vmatprep.subr.mxu0 0.0
    %656 = vmatpush1.msra.mxu0 0.0
    %657 = vmatprep.subr.mxu0 0.0
    %658 = vmatpush1.msra.mxu0 0.0
    %659 = vmatprep.subr.mxu0 0.0
    %660 = vmatpush1.msra.mxu0 0.0
    %661 = vmatprep.subr.mxu0 0.0
    %662 = vmatpush1.msra.mxu0 0.0
    %663 = vmatprep.subr.mxu0 0.0
    %664 = vmatpush1.msra.mxu0 0.0
    %665 = vmatprep.subr.mxu0 0.0
    %666 = vmatpush1.msra.mxu0 0.0
    %667 = vmatprep.subr.mxu0 0.0
    %668 = vmatpush1.msra.mxu0 0.0
    %669 = vmatprep.subr.mxu0 0.0
    %670 = vmatpush1.msra.mxu0 0.0
    %671 = vmatprep.subr.mxu0 0.0
    %672 = vmatpush1.msra.mxu0 0.0
    %673 = vmatprep.subr.mxu0 0.0
    %674 = vmatpush1.msra.mxu0 0.0
    %675 = vmatprep.subr.mxu0 0.0
    %676 = vmatpush1.msra.mxu0 0.0
    %677 = vmatprep.subr.mxu0 0.0
    %678 = vmatpush1.msra.mxu0 0.0
    %679 = vmatprep.subr.mxu0 0.0
    %680 = vmatpush1.msra.mxu0 0.0
    %681 = vmatprep.subr.mxu0 0.0
    %682 = vmatpush1.msra.mxu0 0.0
    %683 = vmatprep.mubr.f32.mxu0 0.0
    %684 = vmatmul.mubr.f32.gmra.mrb[0].mxu0 %v618
    %v685 = vpop.f32.mrb[0].mxu0
    %v686 = vadd.f32 0.0, %v685
    %v687 = vpop.f32.mrb[0].mxu0
    %688 = vdwg.mxu0
    %v689 = vadd.f32 %v165, %v686
    %v690 = vtanh.pop %v689
    %v691 = vmul.f32 %v690, 0.5
    %v692 = vadd.f32 %v691, 0.5
    %v693 = vsel %vm180, %v690, %v692
    %694 = vrot.lane.b32.xlu0 %v693, 64
    %v695 = vpop.permute.xlu0 %694
    %v696 = vmul.f32 %v693, %v695
    %697 = vrot.lane.b32.xlu0 %v696, 96
    %v698 = vpop.permute.xlu0 %697
    %v699 = vmul.f32 %v693, %v616
    %v700 = vadd.f32 %v699, %v698
    %v701 = vtanh.pop %v700
    %v702 = vmul.f32 %v695, %v701
    %703 = vmatprep.subr.mxu0 0.0
    %704 = vmatpush1.msra.mxu0 %v181
    %705 = vmatprep.subr.mxu0 0.0
    %706 = vmatpush1.msra.mxu0 %v182
    %707 = vmatprep.subr.mxu0 0.0
    %708 = vmatpush1.msra.mxu0 %v183
    %709 = vmatprep.subr.mxu0 0.0
    %710 = vmatpush1.msra.mxu0 %v184
    %711 = vmatprep.subr.mxu0 0.0
    %712 = vmatpush1.msra.mxu0 %v185
    %713 = vmatprep.subr.mxu0 0.0
    %714 = vmatpush1.msra.mxu0 %v186
    %715 = vmatprep.subr.mxu0 0.0
    %716 = vmatpush1.msra.mxu0 %v187
    %717 = vmatprep.subr.mxu0 0.0
    %718 = vmatpush1.msra.mxu0 %v188
    %719 = vmatprep.subr.mxu0 0.0
    %720 = vmatpush1.msra.mxu0 %v189
    %721 = vmatprep.subr.mxu0 0.0
    %722 = vmatpush1.msra.mxu0 %v190
    %723 = vmatprep.subr.mxu0 0.0
    %724 = vmatpush1.msra.mxu0 %v191
    %725 = vmatprep.subr.mxu0 0.0
    %726 = vmatpush1.msra.mxu0 %v192
    %727 = vmatprep.subr.mxu0 0.0
    %728 = vmatpush1.msra.mxu0 %v193
    %729 = vmatprep.subr.mxu0 0.0
    %730 = vmatpush1.msra.mxu0 %v194
    %731 = vmatprep.subr.mxu0 0.0
    %732 = vmatpush1.msra.mxu0 %v195
    %733 = vmatprep.subr.mxu0 0.0
    %734 = vmatpush1.msra.mxu0 %v196
    %735 = vmatprep.subr.mxu0 0.0
    %736 = vmatpush1.msra.mxu0 0.0
    %737 = vmatprep.subr.mxu0 0.0
    %738 = vmatpush1.msra.mxu0 0.0
    %739 = vmatprep.subr.mxu0 0.0
    %740 = vmatpush1.msra.mxu0 0.0
    %741 = vmatprep.subr.mxu0 0.0
    %742 = vmatpush1.msra.mxu0 0.0
    %743 = vmatprep.subr.mxu0 0.0
    %744 = vmatpush1.msra.mxu0 0.0
    %745 = vmatprep.subr.mxu0 0.0
    %746 = vmatpush1.msra.mxu0 0.0
    %747 = vmatprep.subr.mxu0 0.0
    %748 = vmatpush1.msra.mxu0 0.0
    %749 = vmatprep.subr.mxu0 0.0
    %750 = vmatpush1.msra.mxu0 0.0
    %751 = vmatprep.subr.mxu0 0.0
    %752 = vmatpush1.msra.mxu0 0.0
    %753 = vmatprep.subr.mxu0 0.0
    %754 = vmatpush1.msra.mxu0 0.0
    %755 = vmatprep.subr.mxu0 0.0
    %756 = vmatpush1.msra.mxu0 0.0
    %757 = vmatprep.subr.mxu0 0.0
    %758 = vmatpush1.msra.mxu0 0.0
    %759 = vmatprep.subr.mxu0 0.0
    %760 = vmatpush1.msra.mxu0 0.0
    %761 = vmatprep.subr.mxu0 0.0
    %762 = vmatpush1.msra.mxu0 0.0
    %763 = vmatprep.subr.mxu0 0.0
    %764 = vmatpush1.msra.mxu0 0.0
    %765 = vmatprep.subr.mxu0 0.0
    %766 = vmatpush1.msra.mxu0 0.0
    %767 = vmatprep.mubr.f32.mxu0 0.0
    %768 = vmatmul.mubr.f32.gmra.mrb[0].mxu0 %v702
    %v769 = vpop.f32.mrb[0].mxu0
    %v770 = vadd.f32 0.0, %v769
    %v771 = vpop.f32.mrb[0].mxu0
    %772 = vdwg.mxu0
    %v773 = vadd.f32 %v170, %v770
    %v774 = vtanh.pop %v773
    %v775 = vmul.f32 %v774, 0.5
    %v776 = vadd.f32 %v775, 0.5
    %v777 = vsel %vm180, %v774, %v776
    %778 = vrot.lane.b32.xlu0 %v777, 64
    %v779 = vpop.permute.xlu0 %778
    %v780 = vmul.f32 %v777, %v779
    %781 = vrot.lane.b32.xlu0 %v780, 96
    %v782 = vpop.permute.xlu0 %781
    %v783 = vmul.f32 %v777, %v700
    %v784 = vadd.f32 %v783, %v782
    %v785 = vtanh.pop %v784
    %v786 = vmul.f32 %v779, %v785
    %787 = vmatprep.subr.mxu0 0.0
    %788 = vmatpush1.msra.mxu0 %v181
    %789 = vmatprep.subr.mxu0 0.0
    %790 = vmatpush1.msra.mxu0 %v182
    %791 = vmatprep.subr.mxu0 0.0
    %792 = vmatpush1.msra.mxu0 %v183
    %793 = vmatprep.subr.mxu0 0.0
    %794 = vmatpush1.msra.mxu0 %v184
    %795 = vmatprep.subr.mxu0 0.0
    %796 = vmatpush1.msra.mxu0 %v185
    %797 = vmatprep.subr.mxu0 0.0
    %798 = vmatpush1.msra.mxu0 %v186
    %799 = vmatprep.subr.mxu0 0.0
    %800 = vmatpush1.msra.mxu0 %v187
    %801 = vmatprep.subr.mxu0 0.0
    %802 = vmatpush1.msra.mxu0 %v188
    %803 = vmatprep.subr.mxu0 0.0
    %804 = vmatpush1.msra.mxu0 %v189
    %805 = vmatprep.subr.mxu0 0.0
    %806 = vmatpush1.msra.mxu0 %v190
    %807 = vmatprep.subr.mxu0 0.0
    %808 = vmatpush1.msra.mxu0 %v191
    %809 = vmatprep.subr.mxu0 0.0
    %810 = vmatpush1.msra.mxu0 %v192
    %811 = vmatprep.subr.mxu0 0.0
    %812 = vmatpush1.msra.mxu0 %v193
    %813 = vmatprep.subr.mxu0 0.0
    %814 = vmatpush1.msra.mxu0 %v194
    %815 = vmatprep.subr.mxu0 0.0
    %816 = vmatpush1.msra.mxu0 %v195
    %817 = vmatprep.subr.mxu0 0.0
    %818 = vmatpush1.msra.mxu0 %v196
    %819 = vmatprep.subr.mxu0 0.0
    %820 = vmatpush1.msra.mxu0 0.0
    %821 = vmatprep.subr.mxu0 0.0
    %822 = vmatpush1.msra.mxu0 0.0
    %823 = vmatprep.subr.mxu0 0.0
    %824 = vmatpush1.msra.mxu0 0.0
    %825 = vmatprep.subr.mxu0 0.0
    %826 = vmatpush1.msra.mxu0 0.0
    %827 = vmatprep.subr.mxu0 0.0
    %828 = vmatpush1.msra.mxu0 0.0
    %829 = vmatprep.subr.mxu0 0.0
    %830 = vmatpush1.msra.mxu0 0.0
    %831 = vmatprep.subr.mxu0 0.0
    %832 = vmatpush1.msra.mxu0 0.0
    %833 = vmatprep.subr.mxu0 0.0
    %834 = vmatpush1.msra.mxu0 0.0
    %835 = vmatprep.subr.mxu0 0.0
    %836 = vmatpush1.msra.mxu0 0.0
    %837 = vmatprep.subr.mxu0 0.0
    %838 = vmatpush1.msra.mxu0 0.0
    %839 = vmatprep.subr.mxu0 0.0
    %840 = vmatpush1.msra.mxu0 0.0
    %841 = vmatprep.subr.mxu0 0.0
    %842 = vmatpush1.msra.mxu0 0.0
    %843 = vmatprep.subr.mxu0 0.0
    %844 = vmatpush1.msra.mxu0 0.0
    %845 = vmatprep.subr.mxu0 0.0
    %846 = vmatpush1.msra.mxu0 0.0
    %847 = vmatprep.subr.mxu0 0.0
    %848 = vmatpush1.msra.mxu0 0.0
    %849 = vmatprep.subr.mxu0 0.0
    %850 = vmatpush1.msra.mxu0 0.0
    %851 = vmatprep.mubr.f32.mxu0 0.0
    %852 = vmatmul.mubr.f32.gmra.mrb[0].mxu0 %v786
    %v853 = vpop.f32.mrb[0].mxu0
    %v854 = vadd.f32 0.0, %v853
    %v855 = vpop.f32.mrb[0].mxu0
    %856 = vdwg.mxu0
    %v857 = vadd.f32 %v175, %v854
    %v858 = vtanh.pop %v857
    %v859 = vmul.f32 %v858, 0.5
    %v860 = vadd.f32 %v859, 0.5
    %v861 = vsel %vm180, %v858, %v860
    %862 = vrot.lane.b32.xlu0 %v861, 64
    %v863 = vpop.permute.xlu0 %862
    %v864 = vmul.f32 %v861, %v863
    %865 = vrot.lane.b32.xlu0 %v864, 96
    %v866 = vpop.permute.xlu0 %865
    %v867 = vmul.f32 %v861, %v784
    %v868 = vadd.f32 %v867, %v866
    %v869 = vtanh.pop %v868
    %v870 = vmul.f32 %v863, %v869
    %v871 = vld [vmem:[#allocation2 + $0x8] sm:$0xff]
    %v872 = vld [vmem:[#allocation2 + $0x18] sm:$0xff]
    %v873 = vld [vmem:[#allocation2 + $0x28] sm:$0xff]
    %v874 = vld [vmem:[#allocation2 + $0x38] sm:$0xff]
    %v875 = vld [vmem:[#allocation2 + $0x48] sm:$0xff]
    %v876 = vld [vmem:[#allocation2 + $0x58] sm:$0xff]
    %v877 = vld [vmem:[#allocation2 + $0x68] sm:$0xff]
    %v878 = vld [vmem:[#allocation2 + $0x78] sm:$0xff]
    %v879 = vld [vmem:[#allocation2 + $0x88] sm:$0xff]
    %v880 = vld [vmem:[#allocation2 + $0x98] sm:$0xff]
    %v881 = vld [vmem:[#allocation2 + $0xa8] sm:$0xff]
    %v882 = vld [vmem:[#allocation2 + $0xb8] sm:$0xff]
    %v883 = vld [vmem:[#allocation2 + $0xc8] sm:$0xff]
    %v884 = vld [vmem:[#allocation2 + $0xd8] sm:$0xff]
    %v885 = vld [vmem:[#allocation2 + $0xe8] sm:$0xff]
    %v886 = vld [vmem:[#allocation2 + $0xf8] sm:$0xff]
    %v887 = vld [vmem:[%s3 + $0x18] sm:$0x1]
    %v888 = vlaneseq
    %v889 = vshrl.u32 %v888, 7
    %v890 = vsub.s32 0, %v889
    %v891 = vrot.slane %v887, %v890
    %892 = vmatprep.subr.mxu0 0.0
    %893 = vmatpush1.msra.mxu0 %v871
    %894 = vmatprep.subr.mxu0 0.0
    %895 = vmatpush1.msra.mxu0 %v872
    %896 = vmatprep.subr.mxu0 0.0
    %897 = vmatpush1.msra.mxu0 %v873
    %898 = vmatprep.subr.mxu0 0.0
    %899 = vmatpush1.msra.mxu0 %v874
    %900 = vmatprep.subr.mxu0 0.0
    %901 = vmatpush1.msra.mxu0 %v875
    %902 = vmatprep.subr.mxu0 0.0
    %903 = vmatpush1.msra.mxu0 %v876
    %904 = vmatprep.subr.mxu0 0.0
    %905 = vmatpush1.msra.mxu0 %v877
    %906 = vmatprep.subr.mxu0 0.0
    %907 = vmatpush1.msra.mxu0 %v878
    %908 = vmatprep.subr.mxu0 0.0
    %909 = vmatpush1.msra.mxu0 %v879
    %910 = vmatprep.subr.mxu0 0.0
    %911 = vmatpush1.msra.mxu0 %v880
    %912 = vmatprep.subr.mxu0 0.0
    %913 = vmatpush1.msra.mxu0 %v881
    %914 = vmatprep.subr.mxu0 0.0
    %915 = vmatpush1.msra.mxu0 %v882
    %916 = vmatprep.subr.mxu0 0.0
    %917 = vmatpush1.msra.mxu0 %v883
    %918 = vmatprep.subr.mxu0 0.0
    %919 = vmatpush1.msra.mxu0 %v884
    %920 = vmatprep.subr.mxu0 0.0
    %921 = vmatpush1.msra.mxu0 %v885
    %922 = vmatprep.subr.mxu0 0.0
    %923 = vmatpush1.msra.mxu0 %v886
    %924 = vmatprep.subr.mxu0 0.0
    %925 = vmatpush1.msra.mxu0 0.0
    %926 = vmatprep.subr.mxu0 0.0
    %927 = vmatpush1.msra.mxu0 0.0
    %928 = vmatprep.subr.mxu0 0.0
    %929 = vmatpush1.msra.mxu0 0.0
    %930 = vmatprep.subr.mxu0 0.0
    %931 = vmatpush1.msra.mxu0 0.0
    %932 = vmatprep.subr.mxu0 0.0
    %933 = vmatpush1.msra.mxu0 0.0
    %934 = vmatprep.subr.mxu0 0.0
    %935 = vmatpush1.msra.mxu0 0.0
    %936 = vmatprep.subr.mxu0 0.0
    %937 = vmatpush1.msra.mxu0 0.0
    %938 = vmatprep.subr.mxu0 0.0
    %939 = vmatpush1.msra.mxu0 0.0
    %940 = vmatprep.subr.mxu0 0.0
    %941 = vmatpush1.msra.mxu0 0.0
    %942 = vmatprep.subr.mxu0 0.0
    %943 = vmatpush1.msra.mxu0 0.0
    %944 = vmatprep.subr.mxu0 0.0
    %945 = vmatpush1.msra.mxu0 0.0
    %946 = vmatprep.subr.mxu0 0.0
    %947 = vmatpush1.msra.mxu0 0.0
    %948 = vmatprep.subr.mxu0 0.0
    %949 = vmatpush1.msra.mxu0 0.0
    %950 = vmatprep.subr.mxu0 0.0
    %951 = vmatpush1.msra.mxu0 0.0
    %952 = vmatprep.subr.mxu0 0.0
    %953 = vmatpush1.msra.mxu0 0.0
    %954 = vmatprep.subr.mxu0 0.0
    %955 = vmatpush1.msra.mxu0 0.0
    %956 = vmatprep.mubr.f32.mxu0 0.0
    %957 = vmatmul.mubr.f32.gmra.mrb[0].mxu0 %v870
    %v958 = vpop.f32.mrb[0].mxu0
    %v959 = vadd.f32 %v891, %v958
    %v960 = vpop.f32.mrb[0].mxu0
    %961 = vdwg.mxu0
    %962 = vst [vmem:[%s4] sm:$0xff] %v959
    // Predicated region
    $region22: #{_lambda_.1} parent=1 // pred_check
      _
    $region23: #{_lambda_.1} parent=1 // pred_check_branch
      %964 = sbr.rel (0) target = $region25
    $region24: #{_lambda_.1} parent=1 // pred_region
      _
    $region25: #{_lambda_.1} parent=1 // pred_fallthru
      _
    // Predicated region
    $region26: #{_lambda_.1} parent=1 // pred_check
      _
    $region27: #{_lambda_.1} parent=1 // pred_check_branch
      %966 = sbr.rel (0) target = $region29
    $region28: #{_lambda_.1} parent=1 // pred_region
      _
    $region29: #{_lambda_.1} parent=1 // pred_fallthru
      _
    %967 = vsyncpa [#allocation3], 1

</llo_original>
